<compile_context>
chip_gen: v7x
topology: tpu7x:2x2x1
jax: 0.10.0
libtpu: 0.0.40
codegen_flags: <defaults>
</compile_context>

<pallas_src>
import math
import numpy as np
import jax
import jax.numpy as jnp
from jax.experimental import pallas as pl
from jax.experimental.pallas import tpu as pltpu

LANE = 128
SUBLANE = 8


def _round_up(a, b):
    return ((a + b - 1) // b) * b


def _cdiv(a, b):
    return -(-a // b)


def _vmem_capacity_bytes():
    try:
        return int(pltpu.get_tpu_info().vmem_capacity_bytes)
    except Exception:
        return 64 << 20          # conservative fallback (v7x per-TC VMEM)


def _unit_gcn_kernel(x_ref, m_ref, shift_ref, o_ref):
    """One (batch, T-tile) grid step: a single fused bf16 MXU matmul.

    x_ref    : (tile_t, V*Cin)  bf16  rows = timesteps, lanes = (vertex, in-ch)
    m_ref    : (V*Cin, NOP)     bf16  folded  A-aggregation x channel-mix + residual
    shift_ref: (1, NOP)         f32   folded conv-bias + BN shift (both branches)
    o_ref    : (tile_t, NOP)    bf16  lanes = (vertex, out-ch) pairs, lane-dense
    """
    acc = jnp.dot(x_ref[...], m_ref[...], preferred_element_type=jnp.float32)
    o_ref[...] = jnp.maximum(acc + shift_ref[...], 0.0).astype(o_ref.dtype)


def unit_gcn_forward(x_nctv, p):
    """x_nctv: (N, C, T, V) float32, PyTorch layout. Returns (N, Cout, T, V) bf16."""
    N, C, T, V = x_nctv.shape
    K = p['A'].shape[0]
    Cout = p['conv_w'].shape[1]
    eps = 1e-5

    if p.get('down_w') is None:
        # identity residual only makes sense when channel counts match
        assert C == Cout, "identity residual requires in_channels == out_channels"

    VC = V * C                              # contraction depth of the fused matmul
    VO = V * Cout
    NOP = _round_up(VO, LANE)               # lane-dense padded output width

    # ---- adjacency L2 normalisation (torch.norm(A, 2, dim=1)), hoisted ----
    A = p['A'].astype(jnp.float32)                                   # [k, v, w]
    A_n = A / (jnp.sqrt(jnp.sum(A * A, axis=1, keepdims=True)) + 1e-4)

    # ---- fold eval-mode BN + conv biases ----
    bn_s = p['bn_gamma'] / jnp.sqrt(p['bn_var'] + eps)               # (Cout,)
    bn_b = p['bn_beta'] - p['bn_mean'] * bn_s
    w_scaled = jnp.transpose(p['conv_w'], (0, 2, 1)) * bn_s[None, None, :]  # (K,Cin,Cout)
    shift = bn_b + bn_s * jnp.sum(p['conv_b'], axis=0)               # (Cout,)

    if p.get('down_w') is None:
        r = jnp.eye(C, dtype=jnp.float32)                            # identity residual
    else:
        d_s = p['down_bn_gamma'] / jnp.sqrt(p['down_bn_var'] + eps)
        d_b = p['down_bn_beta'] - p['down_bn_mean'] * d_s
        r = jnp.transpose(p['down_w']).astype(jnp.float32) * d_s[None, :]   # (Cin,Cout)
        shift = shift + d_s * p['down_b'] + d_b

    # ---- fold A into W: one operator M[(v,c),(w,o)] ----
    m_main = jnp.einsum('kvw,kco->vcwo', A_n, w_scaled)              # main branches
    m_res = jnp.einsum('vw,co->vcwo', jnp.eye(V, dtype=jnp.float32), r)  # residual
    m = (m_main + m_res).reshape(VC, VO)
    m = jnp.pad(m, ((0, 0), (0, NOP - VO))).astype(jnp.bfloat16)
    shift_p = jnp.pad(jnp.tile(shift, V), (0, NOP - VO)).reshape(1, NOP)
    shift_p = shift_p.astype(jnp.float32)
    m_bytes = VC * NOP * 2

    # ---- T-tile sizing: ~35% of generation VMEM, enough grid steps, padded T ----
    vmem = _vmem_capacity_bytes()
    budget = int(0.35 * vmem)
    assert m_bytes <= budget, (
        "folded A*W operator does not fit the VMEM budget; use the two-stage "
        "kernel for large-channel layers (see TODO)")
    per_row = 2 * (VC * 2 + NOP * 2)                 # double-buffered x + out rows (bf16)
    rows_budget = max(SUBLANE, (budget - m_bytes) // per_row)
    min_t_tiles = max(1, _cdiv(8, N))                # >= ~8 grid steps total (v7x megacore)
    rows_steps = max(SUBLANE, _cdiv(T, min_t_tiles))
    tile_t = int(min(T, rows_budget, rows_steps))
    nt = _cdiv(T, tile_t)
    tile_t = _round_up(_cdiv(T, nt), SUBLANE)        # sublane-aligned, never a tiny divisor
    T_pad = nt * tile_t

    # ---- layout: NCTV -> (N, T, V*C) rows, bf16 ----
    # TODO(synk): in a full ST-GCN stack keep activations in this (N, T, V*C) bf16
    # layout between layers so the transpose/pad round trips happen once, not per layer.
    x_rows = jnp.transpose(x_nctv, (0, 2, 3, 1)).reshape(N, T, VC)
    if T_pad != T:
        x_rows = jnp.pad(x_rows, ((0, 0), (0, T_pad - T), (0, 0)))
    x_rows = x_rows.astype(jnp.bfloat16)

    grid = (N, T_pad // tile_t)
    flops = 2 * N * T_pad * VC * NOP
    bytes_accessed = N * T_pad * VC * 2 + N * T_pad * NOP * 2 + m_bytes + NOP * 4
    needed_vmem = m_bytes + NOP * 4 + 2 * tile_t * (VC + NOP) * 2 + (2 << 20)
    vmem_limit = int(min(int(0.9 * vmem), max(needed_vmem, 32 << 20)))

    out_p = pl.pallas_call(
        _unit_gcn_kernel,
        out_shape=jax.ShapeDtypeStruct((N, T_pad, NOP), jnp.bfloat16),
        grid=grid,
        in_specs=[
            pl.BlockSpec((None, tile_t, VC), lambda n, t: (n, t, 0)),   # x rows
            pl.BlockSpec((VC, NOP), lambda n, t: (0, 0)),               # folded operator
            pl.BlockSpec((1, NOP), lambda n, t: (0, 0)),                # folded shift
        ],
        out_specs=pl.BlockSpec((None, tile_t, NOP), lambda n, t: (n, t, 0)),
        compiler_params=pltpu.CompilerParams(
            dimension_semantics=("parallel", "parallel"),
            vmem_limit_bytes=vmem_limit),
        cost_estimate=pl.CostEstimate(
            flops=int(flops), transcendentals=0, bytes_accessed=int(bytes_accessed)),
    )(x_rows, m, shift_p)

    out = out_p[:, :T, :VO].reshape(N, T, V, Cout)   # drop T / lane padding
    return jnp.transpose(out, (0, 3, 1, 2))          # NTVC -> NCTV (bf16)


def reference_forward(x, p):
    """Pure-JAX f32 reference of the PyTorch forward (eval-mode BN)."""
    eps = 1e-5
    A = p['A']
    K = A.shape[0]
    A_n = A / (jnp.sqrt(jnp.sum(A * A, axis=1, keepdims=True)) + 1e-4)
    y = None
    for i in range(K):
        xa = jnp.einsum('nctv,vw->nctw', x, A_n[i])
        z = jnp.einsum('oc,nctw->notw', p['conv_w'][i], xa) \
            + p['conv_b'][i][None, :, None, None]
        y = z if y is None else y + z
    bn_s = p['bn_gamma'] / jnp.sqrt(p['bn_var'] + eps)
    y = (y - p['bn_mean'][None, :, None, None]) * bn_s[None, :, None, None] \
        + p['bn_beta'][None, :, None, None]
    if p.get('down_w') is None:
        res = x
    else:
        res = jnp.einsum('oc,nctv->notv', p['down_w'], x) \
            + p['down_b'][None, :, None, None]
        d_s = p['down_bn_gamma'] / jnp.sqrt(p['down_bn_var'] + eps)
        res = (res - p['down_bn_mean'][None, :, None, None]) * d_s[None, :, None, None] \
            + p['down_bn_beta'][None, :, None, None]
    return jnp.maximum(y + res, 0.0)


if __name__ == "__main__":
    N, Cin, Cout, T, V, K = 2, 4, 8, 8, 16, 3

    key = jax.random.PRNGKey(0)
    k_a, k_w, k_d, k_x = jax.random.split(key, 4)

    # Synthetic adjacency stack (plays the role of PA, initialised from A).
    A = jax.random.uniform(k_a, (K, V, V), jnp.float32)

    # conv_branch_init: normal(0, sqrt(2 / (n * k1 * k2 * branches))), bias = 0
    std_branch = math.sqrt(2.0 / (Cout * Cin * 1 * K))
    conv_w = jax.random.normal(k_w, (K, Cout, Cin), jnp.float32) * std_branch
    conv_b = jnp.zeros((K, Cout), jnp.float32)

    # down conv: kaiming_normal fan_out (fan_out = Cout * 1 * 1), bias = 0
    std_down = math.sqrt(2.0 / Cout)
    down_w = jax.random.normal(k_d, (Cout, Cin), jnp.float32) * std_down
    down_b = jnp.zeros((Cout,), jnp.float32)

    params = dict(
        A=A, conv_w=conv_w, conv_b=conv_b,
        down_w=down_w, down_b=down_b,
        bn_gamma=jnp.full((Cout,), 1e-6, jnp.float32),      # bn_init(self.bn, 1e-6)
        bn_beta=jnp.zeros((Cout,), jnp.float32),
        bn_mean=jnp.zeros((Cout,), jnp.float32),
        bn_var=jnp.ones((Cout,), jnp.float32),
        down_bn_gamma=jnp.ones((Cout,), jnp.float32),       # bn_init(down bn, 1)
        down_bn_beta=jnp.zeros((Cout,), jnp.float32),
        down_bn_mean=jnp.zeros((Cout,), jnp.float32),
        down_bn_var=jnp.ones((Cout,), jnp.float32),
    )

    x = jax.random.normal(k_x, (N, Cin, T, V), jnp.float32)   # PyTorch NCTV layout

    out = unit_gcn_forward(x, params)
    out = jax.block_until_ready(out)

    ref = reference_forward(x, params)
    # Tolerance accounts for bf16 operands / bf16 output storage (f32 MXU accumulate).
    np.testing.assert_allclose(np.asarray(out.astype(jnp.float32)), np.asarray(ref),
                               rtol=2e-2, atol=2e-2)
    assert out.shape == (N, Cout, T, V)

    print("KERNEL_OK")
</pallas_src>

<mosaic_0001>
module attributes {stable_mosaic.version = 11 : i64} {
  func.func @_unit_gcn_kernel(%arg0: i32, %arg1: i32, %arg2: memref<1x8x64xbf16, #tpu.memory_space<vmem>>, %arg3: memref<64x128xbf16, #tpu.memory_space<vmem>>, %arg4: memref<1x128xf32, #tpu.memory_space<vmem>>, %arg5: memref<1x8x128xbf16, #tpu.memory_space<vmem>>) attributes {dimension_semantics = [#tpu.dimension_semantics<parallel>, #tpu.dimension_semantics<parallel>], iteration_bounds = array<i64: 2, 1>, scalar_prefetch = 0 : i64, scratch_operands = 0 : i64, tpu.core_type = #tpu.core_type<tc>, window_params = [{transform_indices = @transform_0, window_bounds = array<i64: 1, 8, 64>}, {pipeline_mode = #tpu.pipeline_mode<synchronous>, transform_indices = @transform_1, window_bounds = array<i64: 64, 128>}, {pipeline_mode = #tpu.pipeline_mode<synchronous>, transform_indices = @transform_2, window_bounds = array<i64: 1, 128>}, {transform_indices = @transform_3, window_bounds = array<i64: 1, 8, 128>}]} {
    %c0 = arith.constant 0 : index
    %c0_0 = arith.constant 0 : index
    %c0_1 = arith.constant 0 : index
    %0 = vector.load %arg2[%c0, %c0_0, %c0_1] : memref<1x8x64xbf16, #tpu.memory_space<vmem>>, vector<1x8x64xbf16>
    %1 = vector.shape_cast %0 : vector<1x8x64xbf16> to vector<8x64xbf16>
    %c0_2 = arith.constant 0 : index
    %c0_3 = arith.constant 0 : index
    %2 = vector.load %arg3[%c0_2, %c0_3] : memref<64x128xbf16, #tpu.memory_space<vmem>>, vector<64x128xbf16>
    %cst = arith.constant dense<0.000000e+00> : vector<8x128xf32>
    %3 = tpu.matmul %1, %2, %cst {dimension_numbers = #tpu.dot_dimension_numbers<[1], [0], [0], [1], [0, 0, 1, 1], [], []>} : vector<8x64xbf16>, vector<64x128xbf16>, vector<8x128xf32> -> vector<8x128xf32>
    %c0_4 = arith.constant 0 : index
    %c0_5 = arith.constant 0 : index
    %4 = vector.load %arg4[%c0_4, %c0_5] : memref<1x128xf32, #tpu.memory_space<vmem>>, vector<1x128xf32>
    %5 = vector.broadcast %4 : vector<1x128xf32> to vector<8x128xf32>
    %6 = arith.addf %3, %5 : vector<8x128xf32>
    %cst_6 = arith.constant 0.000000e+00 : f32
    %7 = vector.broadcast %cst_6 : f32 to vector<8x128xf32>
    %8 = arith.maximumf %6, %7 : vector<8x128xf32>
    %9 = arith.truncf %8 : vector<8x128xf32> to vector<8x128xbf16>
    %c0_7 = arith.constant 0 : index
    %c0_8 = arith.constant 0 : index
    %c0_9 = arith.constant 0 : index
    %10 = vector.load %arg5[%c0_7, %c0_8, %c0_9] : memref<1x8x128xbf16, #tpu.memory_space<vmem>>, vector<1x8x128xbf16>
    %11 = vector.shape_cast %10 : vector<1x8x128xbf16> to vector<8x128xbf16>
    %12 = vector.shape_cast %9 : vector<8x128xbf16> to vector<1x8x128xbf16>
    tpu.vector_store %arg5[%c0_7, %c0_8, %c0_9], %12 {strides = array<i32>} : memref<1x8x128xbf16, #tpu.memory_space<vmem>>, vector<1x8x128xbf16>,
    return
  }
  func.func @transform_0(%arg0: i32, %arg1: i32) -> (i32, i32, i32) {
    %c0_i32 = arith.constant 0 : i32
    %c0_i32_0 = arith.constant 0 : i32
    return %arg0, %arg1, %c0_i32 : i32, i32, i32
  }
  func.func @transform_1(%arg0: i32, %arg1: i32) -> (i32, i32) {
    %c0_i32 = arith.constant 0 : i32
    %c0_i32_0 = arith.constant 0 : i32
    %c0_i32_1 = arith.constant 0 : i32
    return %c0_i32, %c0_i32_0 : i32, i32
  }
  func.func @transform_2(%arg0: i32, %arg1: i32) -> (i32, i32) {
    %c0_i32 = arith.constant 0 : i32
    %c0_i32_0 = arith.constant 0 : i32
    %c0_i32_1 = arith.constant 0 : i32
    return %c0_i32, %c0_i32_0 : i32, i32
  }
  func.func @transform_3(%arg0: i32, %arg1: i32) -> (i32, i32, i32) {
    %c0_i32 = arith.constant 0 : i32
    %c0_i32_0 = arith.constant 0 : i32
    return %arg0, %arg1, %c0_i32 : i32, i32, i32
  }
}

</mosaic_0001>

<llo_original>
// kernel: tpu_custom_call.1
$region0: #{tpu_custom_call.1}
  #allocation0 [shape = 'u32[]', space=smem, size = 0x4, offset = 0x4, fixed_abs, tag = 'smem constant byte address 0x4 - core index']
  #allocation1 [shape = 'u32[144,128]{1,0:T(1,128)}', space=vmem, size = 0x12000, scoped, tag = 'internal scratch']
  %s0 = inlined_call_operand.hbm [shape: bf16[2,8,64], index: 0, kind: input, shape index: {}]
  %s1 = inlined_call_operand.hbm [shape: bf16[64,128], index: 1, kind: input, shape index: {}]
  %s2 = inlined_call_operand.vmem [shape: f32[1,128], index: 2, kind: input, shape index: {}]
  %s3 = inlined_call_operand.hbm [shape: bf16[2,8,128], index: 3, kind: output, shape index: {}]
  %s4 = sld [smem:[#allocation0]]
  $region53: #{tpu_custom_call.1} parent=0
    _
  %s6 = ssub.s32 1, %s4
  %s7 = scalar_select 0, %s6, %s4
  $region1: #{tpu_custom_call.1} parent=0
    #allocation2 [shape = 'u8[4096]{0}', space=vmem, size = 0x1000, scoped, tag = 'input window, operand 0']
    #allocation3 [shape = 's32[2]{0}', space=sflag, size = 0x8, scoped, tag = 'scoped memory for tpu_custom_call.1']
    #allocation4 [shape = 's32[2]{0}', space=sflag, size = 0x8, scoped, tag = 'scoped memory for tpu_custom_call.1']
    #allocation5 [shape = 'u8[16384]{0}', space=vmem, size = 0x4000, scoped, tag = 'input window, operand 1, single buffered']
    #allocation6 [shape = 's32[1]{0}', space=sflag, size = 0x4, scoped, tag = 'scoped memory for tpu_custom_call.1']
    #allocation7 [shape = 'u8[4096]{0}', space=vmem, size = 0x1000, scoped, tag = 'output window, operand 0']
    %8 = vsyncpa [#allocation3], 0
    %s9 = scalar_lea.sflag [#allocation3], 1
    %10 = vsyncpa %s9, 0
    %11 = vsyncpa [#allocation6], 0
    %12 = vsyncpa [#allocation4], 0
    %s13 = scalar_lea.sflag [#allocation4], 1
    %14 = vsyncpa %s13, 0
    loop: start=0, step=1, limit=4
    $region2: #{tpu_custom_call.1} parent=1 // loop_pre_header
      _
    $region3: #{tpu_custom_call.1} parent=1 // loop_header
      %s16 = sphi 0, %s20
      %p17 = scmp.ge.s32.totalorder %s16, 4
      %s23 = sphi 0, %s35
      %s24 = sphi 0, %s31
      %s25 = sphi 0, %s23
      %s26 = sphi 0, %s24
      %s27 = sphi 0, %s25
      %s28 = sphi 0, %s26
      %s40 = sphi 0, %s42
      %s43 = sphi 0, %s40
      %s44 = sphi 0, %s43
      %s60 = sphi 0, %s44
      %s64 = sphi 0, %s64
      %s66 = sphi 0, %s64
      %s67 = sphi 0, %s66
      %s81 = sphi 0, %s67
      %s85 = sphi 0, %s85
      %s87 = sphi 0, %s85
      %s88 = sphi 0, %s87
      %s102 = sphi 0, %s88
      %s110 = sphi 0, %s112
      %s113 = sphi 0, %s110
      %s114 = sphi 0, %s113
      %s130 = sphi 0, %s114
    $region4: #{tpu_custom_call.1} parent=1 // loop_header_branch
      %19 = sbr.rel (%p17) target = $region8
    $region5: #{tpu_custom_call.1} parent=1 // loop_body
      %s21 = ssub.s32 %s16, 1
      %s22 = ssub.s32 %s16, 2
      %s29 = sadd.s32 1, %s24
      %p30 = scmp.ge.s32.totalorder %s29, 1
      %s31 = scalar_select %p30, 0, %s29
      %s32 = sadd.s32 1, %s23
      %s33 = scalar_select %p30, %s32, %s23
      %p34 = scmp.ge.s32.totalorder %s33, 2
      %s35 = scalar_select %p34, 0, %s33
      %s36 = ssub.s32 %s23, %s35
      %s37 = ssub.s32 %s24, %s31
      %s38 = sor.u32 %s36, %s37
      %p39 = scmp.eq.s32.totalorder %s38, 0
      %s41 = sadd.s32 %s40, 1
      %s42 = scalar_select %p39, %s40, %s41
      %p45 = pneg %p39
      %p46 = scmp.eq.s32.totalorder %s16, 1
      %p47 = por %p45, %p46
      %p48 = scmp.ne.s32.totalorder %s40, %s43
      %p49 = scmp.eq.s32.totalorder %s16, 0
      %p50 = por %p48, %p49
      %p51 = scmp.ne.s32.totalorder %s40, %s43
      %p52 = scmp.eq.s32.totalorder %s21, 1
      %p53 = por %p51, %p52
      %p54 = scmp.ne.s32.totalorder %s43, %s44
      %p55 = scmp.eq.s32.totalorder %s21, 0
      %p56 = por %p54, %p55
      %p57 = scmp.ne.s32.totalorder %s43, %s44
      %p58 = scmp.eq.s32.totalorder %s22, 1
      %p59 = por %p57, %p58
      %p61 = scmp.ne.s32.totalorder %s44, %s60
      %p62 = scmp.eq.s32.totalorder %s22, 0
      %p63 = por %p61, %p62
      %s65 = sadd.s32 %s64, 1
      %p68 = scmp.eq.s32.totalorder %s16, 1
      %p69 = scmp.ne.s32.totalorder %s64, %s66
      %p70 = scmp.eq.s32.totalorder %s16, 0
      %p71 = por %p69, %p70
      %p72 = scmp.ne.s32.totalorder %s64, %s66
      %p73 = scmp.eq.s32.totalorder %s21, 1
      %p74 = por %p72, %p73
      %p75 = scmp.ne.s32.totalorder %s66, %s67
      %p76 = scmp.eq.s32.totalorder %s21, 0
      %p77 = por %p75, %p76
      %p78 = scmp.ne.s32.totalorder %s66, %s67
      %p79 = scmp.eq.s32.totalorder %s22, 1
      %p80 = por %p78, %p79
      %p82 = scmp.ne.s32.totalorder %s67, %s81
      %p83 = scmp.eq.s32.totalorder %s22, 0
      %p84 = por %p82, %p83
      %s86 = sadd.s32 %s85, 1
      %p89 = scmp.eq.s32.totalorder %s16, 1
      %p90 = scmp.ne.s32.totalorder %s85, %s87
      %p91 = scmp.eq.s32.totalorder %s16, 0
      %p92 = por %p90, %p91
      %p93 = scmp.ne.s32.totalorder %s85, %s87
      %p94 = scmp.eq.s32.totalorder %s21, 1
      %p95 = por %p93, %p94
      %p96 = scmp.ne.s32.totalorder %s87, %s88
      %p97 = scmp.eq.s32.totalorder %s21, 0
      %p98 = por %p96, %p97
      %p99 = scmp.ne.s32.totalorder %s87, %s88
      %p100 = scmp.eq.s32.totalorder %s22, 1
      %p101 = por %p99, %p100
      %p103 = scmp.ne.s32.totalorder %s88, %s102
      %p104 = scmp.eq.s32.totalorder %s22, 0
      %p105 = por %p103, %p104
      %s106 = ssub.s32 %s23, %s35
      %s107 = ssub.s32 %s24, %s31
      %s108 = sor.u32 %s106, %s107
      %p109 = scmp.eq.s32.totalorder %s108, 0
      %s111 = sadd.s32 %s110, 1
      %s112 = scalar_select %p109, %s110, %s111
      %p115 = pneg %p109
      %p116 = scmp.eq.s32.totalorder %s16, 1
      %p117 = por %p115, %p116
      %p118 = scmp.ne.s32.totalorder %s110, %s113
      %p119 = scmp.eq.s32.totalorder %s16, 0
      %p120 = por %p118, %p119
      %p121 = scmp.ne.s32.totalorder %s110, %s113
      %p122 = scmp.eq.s32.totalorder %s21, 1
      %p123 = por %p121, %p122
      %p124 = scmp.ne.s32.totalorder %s113, %s114
      %p125 = scmp.eq.s32.totalorder %s21, 0
      %p126 = por %p124, %p125
      %p127 = scmp.ne.s32.totalorder %s113, %s114
      %p128 = scmp.eq.s32.totalorder %s22, 1
      %p129 = por %p127, %p128
      %p131 = scmp.ne.s32.totalorder %s114, %s130
      %p132 = scmp.eq.s32.totalorder %s22, 0
      %p133 = por %p131, %p132
      %p134 = scmp.le.s32.totalorder 1, %s16
      %p135 = scmp.lt.s32.totalorder %s16, 3
      %p136 = pnand %p134, %p135
      %p137 = pneg %p136
      // Predicated region
      $region9: #{tpu_custom_call.1} parent=5 // pred_check
        _
      $region10: #{tpu_custom_call.1} parent=5 // pred_check_branch
        %139 = sbr.rel (%p136) target = $region12
      $region11: #{tpu_custom_call.1} parent=5 // pred_region
        %s140 = ssub.s32 %s16, 1
        // Predicated region
        $region13: #{tpu_custom_call.1} parent=11 // pred_check
          %p141 = pneg %p77
        $region14: #{tpu_custom_call.1} parent=11 // pred_check_branch
          %143 = sbr.rel (%p141) target = $region16
        $region15: #{tpu_custom_call.1} parent=11 // pred_region
          %s145 = ssub.s32 512, 512
          %146 = vsyncadd [#allocation6], %s145
          %s147 = sshll.u32 [#allocation5], 4
          %s148 = int_to_ptr.vmem [resolvable:$true] %s147
          %153 = dma.hbm_to_vmem [thread:$0]  %s1, 512, %s148, [#allocation6], 64, 64, 4
        $region16: #{tpu_custom_call.1} parent=11 // pred_fallthru
          _
        // Predicated region
        $region17: #{tpu_custom_call.1} parent=11 // pred_check
          %p154 = pneg %p98
        $region18: #{tpu_custom_call.1} parent=11 // pred_check_branch
          %156 = sbr.rel (%p154) target = $region20
        $region19: #{tpu_custom_call.1} parent=11 // pred_region
          _
        $region20: #{tpu_custom_call.1} parent=11 // pred_fallthru
          _
      $region12: #{tpu_custom_call.1} parent=5 // pred_fallthru
        _
      %p157 = scmp.lt.s32.totalorder %s16, 2
      // Predicated region
      $region21: #{tpu_custom_call.1} parent=5 // pred_check
        %p158 = pneg %p157
      $region22: #{tpu_custom_call.1} parent=5 // pred_check_branch
        %160 = sbr.rel (%p158) target = $region24
      $region23: #{tpu_custom_call.1} parent=5 // pred_region
        // Predicated region
        $region25: #{tpu_custom_call.1} parent=23 // pred_check
          %p161 = pneg %p50
        $region26: #{tpu_custom_call.1} parent=23 // pred_check_branch
          %163 = sbr.rel (%p161) target = $region28
        $region27: #{tpu_custom_call.1} parent=23 // pred_region
          %s164 = sand.u32 %s40, 1
          %s165 = scalar_lea.sflag [#allocation3], %s164
          %s166 = sand.u32 %s40, 1
          %s167 = smul.addr %s166, 4
          %s168 = scalar_lea.vmem [#allocation2], %s167
          %s170 = ssub.s32 64, 64
          %171 = vsyncadd %s165, %s170
          %s172 = sadd.s32 %s24, %s23
          %s173 = smul.addr %s172, 64
          %s174 = scalar_lea.hbm %s0, %s173
          %s176 = sshll.u32 %s168, 4
          %s177 = int_to_ptr.vmem [resolvable:$true] %s176
          %179 = dma.hbm_to_vmem [thread:$0]  %s174, 64, %s177, %s165
        $region28: #{tpu_custom_call.1} parent=23 // pred_fallthru
          _
      $region24: #{tpu_custom_call.1} parent=5 // pred_fallthru
        _
      %p180 = scmp.le.s32.totalorder 1, %s16
      %p181 = scmp.lt.s32.totalorder %s16, 3
      %p182 = pnand %p180, %p181
      %p183 = pneg %p182
      // Predicated region
      $region29: #{tpu_custom_call.1} parent=5 // pred_check
        _
      $region30: #{tpu_custom_call.1} parent=5 // pred_check_branch
        %185 = sbr.rel (%p182) target = $region32
      $region31: #{tpu_custom_call.1} parent=5 // pred_region
        %s186 = ssub.s32 %s16, 1
        %s187 = sand.u32 %s43, 1
        %s188 = scalar_lea.sflag [#allocation3], %s187
        %s189 = sand.u32 %s43, 1
        %s190 = smul.addr %s189, 4
        %s191 = scalar_lea.vmem [#allocation2], %s190
        // Predicated region
        $region33: #{tpu_custom_call.1} parent=31 // pred_check
          %p192 = pneg %p56
        $region34: #{tpu_custom_call.1} parent=31 // pred_check_branch
          %194 = sbr.rel (%p192) target = $region36
        $region35: #{tpu_custom_call.1} parent=31 // pred_region
          %195 = dma.done %s188, 64
        $region36: #{tpu_custom_call.1} parent=31 // pred_fallthru
          _
        // Predicated region
        $region37: #{tpu_custom_call.1} parent=31 // pred_check
          %p196 = pneg %p77
        $region38: #{tpu_custom_call.1} parent=31 // pred_check_branch
          %198 = sbr.rel (%p196) target = $region40
        $region39: #{tpu_custom_call.1} parent=31 // pred_region
          %199 = dma.done [#allocation6], 512
        $region40: #{tpu_custom_call.1} parent=31 // pred_fallthru
          _
        %s200 = sand.u32 %s43, 1
        %s201 = scalar_lea.sflag [#allocation3], %s200
        %s202 = sand.u32 %s43, 1
        %s203 = smul.addr %s202, 4
        %s204 = scalar_lea.vmem [#allocation2], %s203
        %p205 = pneg %p56
        %p206 = pneg %p53
        %p207 = pneg %p77
        %p208 = pneg %p74
        %p209 = pneg %p98
        %p210 = pneg %p95
        %p211 = pneg %p126
        %p212 = pneg %p123
        %s213 = sand.u32 %s113, 1
        %s214 = scalar_lea.sflag [#allocation4], %s213
        %s215 = sand.u32 %s113, 1
        %s216 = smul.addr %s215, 4
        %s217 = scalar_lea.vmem [#allocation7], %s216
        %v219 = vld [vmem:[%s191] sm:$0xf]
        %v220 = vld [vmem:[#allocation5] sm:$0xf]
        %v221 = vld [vmem:[#allocation5 + $0x4] sm:$0xf]
        %v222 = vld [vmem:[#allocation5 + $0x8] sm:$0xf]
        %v223 = vld [vmem:[#allocation5 + $0xc] sm:$0xf]
        %v224 = vld [vmem:[#allocation5 + $0x10] sm:$0xf]
        %v225 = vld [vmem:[#allocation5 + $0x14] sm:$0xf]
        %v226 = vld [vmem:[#allocation5 + $0x18] sm:$0xf]
        %v227 = vld [vmem:[#allocation5 + $0x1c] sm:$0xf]
        %v228 = vld [vmem:[%s2] sm:$0x1]
        %v230 = vlaneseq
        %v231 = vshrl.u32 %v230, 7
        %v232 = vsub.s32 0, %v231
        %v233 = vrot.slane %v228, %v232
        %v243 = vunpack.c.l.b16 %v220
        %v244 = vunpack.c.l.b16 %v221
        %v245 = vunpack.c.l.b16 %v222
        %v246 = vunpack.c.l.b16 %v223
        %v247 = vunpack.c.l.b16 %v224
        %v248 = vunpack.c.l.b16 %v225
        %v249 = vunpack.c.l.b16 %v226
        %v250 = vunpack.c.l.b16 %v227
        %v251 = vpack.c.b16 %v244, %v243
        %v252 = vpack.c.b16 %v246, %v245
        %v253 = vpack.c.b16 %v248, %v247
        %v254 = vpack.c.b16 %v250, %v249
        %vm259 = vcmask 523264
        %v261 = vsel %vm259, %v219, 0
        %263 = vmatprep.subr.bf16.mxu0 0
        %264 = vmatpush1.bf16.msra.mxu0 %v251
        %265 = vmatprep.subr.bf16.mxu0 0
        %266 = vmatpush1.bf16.msra.mxu0 %v252
        %267 = vmatprep.subr.bf16.mxu0 0
        %268 = vmatpush1.bf16.msra.mxu0 %v253
        %269 = vmatprep.subr.bf16.mxu0 0
        %270 = vmatpush1.bf16.msra.mxu0 %v254
        %271 = vmatprep.subr.bf16.mxu0 0
        %272 = vmatpush1.bf16.msra.mxu0 0
        %273 = vmatprep.subr.bf16.mxu0 0
        %274 = vmatpush1.bf16.msra.mxu0 0
        %275 = vmatprep.subr.bf16.mxu0 0
        %276 = vmatpush1.bf16.msra.mxu0 0
        %277 = vmatprep.subr.bf16.mxu0 0
        %278 = vmatpush1.bf16.msra.mxu0 0
        %279 = vmatprep.subr.bf16.mxu0 0
        %280 = vmatpush1.bf16.msra.mxu0 0
        %281 = vmatprep.subr.bf16.mxu0 0
        %282 = vmatpush1.bf16.msra.mxu0 0
        %283 = vmatprep.subr.bf16.mxu0 0
        %284 = vmatpush1.bf16.msra.mxu0 0
        %285 = vmatprep.subr.bf16.mxu0 0
        %286 = vmatpush1.bf16.msra.mxu0 0
        %287 = vmatprep.subr.bf16.mxu0 0
        %288 = vmatpush1.bf16.msra.mxu0 0
        %289 = vmatprep.subr.bf16.mxu0 0
        %290 = vmatpush1.bf16.msra.mxu0 0
        %291 = vmatprep.subr.bf16.mxu0 0
        %292 = vmatpush1.bf16.msra.mxu0 0
        %293 = vmatprep.subr.bf16.mxu0 0
        %294 = vmatpush1.bf16.msra.mxu0 0
        %295 = vmatprep.mubr.bf16.mxu0 0
        %296 = vmatmul.mubr.bf16.gmra.mrb[0].mxu0 %v261
        %v297 = vpop.f32.mrb[0].mxu0
        %v298 = vadd.f32 %v233, %v297
        %v299 = vpop.f32.mrb[0].mxu0
        %v300 = vpop.f32.mrb[0].mxu0
        %v301 = vpop.f32.mrb[0].mxu0
        %302 = vdwg.mxu0
        %v303 = vmax.f32 %v298, 0.0
        %v304 = vpack.c.bf16 %v303, %v303
        %305 = vst [vmem:[%s217] sm:$0xf] %v304
        %s306 = sand.u32 %s113, 1
        %s307 = scalar_lea.sflag [#allocation4], %s306
        %s308 = sand.u32 %s113, 1
        %s309 = smul.addr %s308, 4
        %s310 = scalar_lea.vmem [#allocation7], %s309
        // Predicated region
        $region41: #{tpu_custom_call.1} parent=31 // pred_check
          %p311 = pneg %p123
        $region42: #{tpu_custom_call.1} parent=31 // pred_check_branch
          %313 = sbr.rel (%p311) target = $region44
        $region43: #{tpu_custom_call.1} parent=31 // pred_region
          %s315 = ssub.s32 64, 64
          %316 = vsyncadd %s307, %s315
          %s317 = sadd.s32 %s26, %s25
          %s318 = smul.addr %s317, 64
          %s319 = scalar_lea.hbm %s3, %s318
          %s321 = sshll.u32 %s310, 4
          %s322 = int_to_ptr.vmem [resolvable:$true] %s321
          %324 = dma.vmem_to_hbm [thread:$0]  %s322, 64, %s319, %s307
        $region44: #{tpu_custom_call.1} parent=31 // pred_fallthru
          _
      $region32: #{tpu_custom_call.1} parent=5 // pred_fallthru
        _
      %p325 = scmp.le.s32.totalorder 2, %s16
      // Predicated region
      $region45: #{tpu_custom_call.1} parent=5 // pred_check
        %p326 = pneg %p325
      $region46: #{tpu_custom_call.1} parent=5 // pred_check_branch
        %328 = sbr.rel (%p326) target = $region48
      $region47: #{tpu_custom_call.1} parent=5 // pred_region
        %s329 = ssub.s32 %s16, 2
        // Predicated region
        $region49: #{tpu_custom_call.1} parent=47 // pred_check
          %p330 = pneg %p129
        $region50: #{tpu_custom_call.1} parent=47 // pred_check_branch
          %332 = sbr.rel (%p330) target = $region52
        $region51: #{tpu_custom_call.1} parent=47 // pred_region
          %s333 = sand.u32 %s114, 1
          %s334 = scalar_lea.sflag [#allocation4], %s333
          %s335 = sand.u32 %s114, 1
          %s336 = smul.addr %s335, 4
          %s337 = scalar_lea.vmem [#allocation7], %s336
          %338 = dma.done %s334, 64
        $region52: #{tpu_custom_call.1} parent=47 // pred_fallthru
          _
      $region48: #{tpu_custom_call.1} parent=5 // pred_fallthru
        _
    $region6: #{tpu_custom_call.1} parent=1 // loop_footer
      %s20 = sadd.s32 1, %s16
    $region7: #{tpu_custom_call.1} parent=1 // loop_footer_branch
      %15 = sbr.rel target = $region3
    $region8: #{tpu_custom_call.1} parent=1 // loop_exit
      _
    %339 = vsyncpa [#allocation3], 1
    %s340 = scalar_lea.sflag [#allocation3], 1
    %341 = vsyncpa %s340, 1
    %342 = vsyncpa [#allocation6], 1
    %343 = vsyncpa [#allocation4], 1
    %s344 = scalar_lea.sflag [#allocation4], 1
    %345 = vsyncpa %s344, 1

</llo_original>
